<compile_context>
chip_gen: v5e
topology: v5e:2x2
jax: 0.10.0
libtpu: 0.0.40
codegen_flags: <defaults>
</compile_context>

<pallas_src>
import jax
import jax.numpy as jnp
from jax.experimental import pallas as pl
from jax.experimental.pallas import tpu as pltpu

LANE = 128      # TPU lane width: class dim padded to a multiple of this
SUBLANE = 8     # f32 sublane granularity
MIB = 1024 * 1024


def _round_up(x, m):
    return ((x + m - 1) // m) * m


def logistic_kernel(x_ref, w_ref, b_ref, o_ref):
    # x_ref: (tm, D) f32   w_ref: (D, C_pad) bf16   b_ref: (1, C_pad) f32
    # o_ref: (tm, C_pad) f32
    xb = x_ref[...].astype(w_ref.dtype)            # bf16 MXU operand, f32 accum below
    z = jnp.dot(xb, w_ref[...], preferred_element_type=jnp.float32)
    z = z + b_ref[...]                             # (tm, C_pad) + (1, C_pad) broadcast
    # sigmoid(z) = 0.5 * tanh(z/2) + 0.5 : single EUP op, exact & overflow-free.
    o_ref[...] = (0.5 * jnp.tanh(0.5 * z) + 0.5).astype(o_ref.dtype)


def prepare_params(weight, bias, mxu_dtype=jnp.bfloat16):
    """One-time parameter prep: pad class dim to a lane multiple, transpose to
    (D, C_pad) so the kernel runs a plain (M,K)x(K,N) contraction, cast to the
    MXU-native dtype. Reuse the result across calls."""
    C, D = weight.shape
    assert bias.shape == (C,)
    C_pad = _round_up(C, LANE)
    if C_pad != C:
        weight = jnp.pad(weight, ((0, C_pad - C), (0, 0)))
        bias = jnp.pad(bias, (0, C_pad - C))
    w_t = weight.T.astype(mxu_dtype)               # (D, C_pad)
    b2 = bias.reshape(1, C_pad).astype(jnp.float32)
    return w_t, b2, C


def _vmem_budget_bytes():
    try:
        cap = pltpu.get_tpu_info().vmem_capacity_bytes
    except Exception:
        cap = 64 * MIB                             # conservative: v7x per-TC VMEM
    return int(cap * 0.75)


def logistic_regression_prepared(x, w_t, b2, *, block_m=512):
    """sigmoid(x @ W^T + b) with prepared (D, C_pad) weight and (1, C_pad) bias."""
    B, D = x.shape
    D2, C_pad = w_t.shape
    assert D == D2 and b2.shape == (1, C_pad) and C_pad % LANE == 0

    budget = _vmem_budget_bytes()
    w_bytes = 2 * D * C_pad * w_t.dtype.itemsize   # double-buffered resident weight
    b_bytes = 2 * SUBLANE * C_pad * 4               # bias (sublane-padded), 2 buffers

    def footprint(t):
        return (2 * t * D * 4                      # x tiles (f32, double-buffered)
                + 2 * t * C_pad * 4                # out tiles (double-buffered)
                + t * (D * 2 + C_pad * 4)          # in-kernel bf16 cast + f32 z temps
                + w_bytes + b_bytes)

    # Batch tile: big by default; ensure >=2 tiles when possible so the
    # "parallel" axis shards across v7x's two TensorCores; shrink to fit VMEM.
    tm = min(block_m, _round_up(B, SUBLANE))
    if pl.cdiv(B, tm) < 2 and B >= 2 * SUBLANE:
        tm = _round_up(pl.cdiv(B, 2), SUBLANE)
    while tm > SUBLANE and footprint(tm) > budget:
        tm = _round_up(tm // 2, SUBLANE)

    grid = (pl.cdiv(B, tm),)                       # ragged last block handled by Pallas

    cost = pl.CostEstimate(
        flops=2 * B * D * C_pad,
        transcendentals=B * C_pad,
        bytes_accessed=(4 * B * D + w_t.dtype.itemsize * D * C_pad
                        + 4 * C_pad + 4 * B * C_pad))

    vmem_limit = int(min(max(footprint(tm) + 4 * MIB, 16 * MIB), budget + 16 * MIB))

    out = pl.pallas_call(
        logistic_kernel,
        out_shape=jax.ShapeDtypeStruct((B, C_pad), jnp.float32),
        grid_spec=pl.GridSpec(
            grid=grid,
            in_specs=[
                pl.BlockSpec((tm, D), lambda i: (i, 0)),      # x marches over batch
                pl.BlockSpec((D, C_pad), lambda i: (0, 0)),   # weight VMEM-resident
                pl.BlockSpec((1, C_pad), lambda i: (0, 0)),   # bias VMEM-resident
            ],
            out_specs=pl.BlockSpec((tm, C_pad), lambda i: (i, 0)),
        ),
        compiler_params=pltpu.CompilerParams(
            dimension_semantics=("parallel",),     # independent batch tiles -> megacore
            vmem_limit_bytes=vmem_limit),
        cost_estimate=cost,
    )(x, w_t, b2)
    return out


def logistic_regression(x, weight, bias, *, block_m=512):
    """x: (B, D) f32; weight: (C, D) f32 (nn.Linear layout); bias: (C,) f32."""
    w_t, b2, C = prepare_params(weight, bias)
    out = logistic_regression_prepared(x, w_t, b2, block_m=block_m)
    return out[:, :C]


if __name__ == "__main__":
    # Small shapes consistent with nn.Linear(in_dim, n_class)
    batch, in_dim, n_class = 8, 32, 16

    key = jax.random.PRNGKey(0)
    kx, kw, kb = jax.random.split(key, 3)

    x = jax.random.normal(kx, (batch, in_dim), dtype=jnp.float32)
    # Deterministic parameter init (mimics nn.Linear's uniform bound 1/sqrt(in_dim))
    bound = 1.0 / (in_dim ** 0.5)
    weight = jax.random.uniform(kw, (n_class, in_dim), minval=-bound, maxval=bound,
                                dtype=jnp.float32)
    bias = jax.random.uniform(kb, (n_class,), minval=-bound, maxval=bound,
                              dtype=jnp.float32)

    out = logistic_regression(x, weight, bias)
    jax.block_until_ready(out)

    # Cross-check against plain f32 JAX reference (bf16 MXU operands -> small cast error)
    ref = jax.nn.sigmoid(x @ weight.T + bias)
    assert out.shape == (batch, n_class)
    assert jnp.allclose(out, ref, atol=5e-3, rtol=5e-3)

    print("KERNEL_OK")
</pallas_src>

<mosaic_0001>
module attributes {stable_mosaic.version = 11 : i64} {
  func.func @logistic_kernel(%arg0: i32, %arg1: memref<8x32xf32, #tpu.memory_space<vmem>>, %arg2: memref<32x128xbf16, #tpu.memory_space<vmem>>, %arg3: memref<1x128xf32, #tpu.memory_space<vmem>>, %arg4: memref<8x128xf32, #tpu.memory_space<vmem>>) attributes {dimension_semantics = [#tpu.dimension_semantics<parallel>], iteration_bounds = array<i64: 1>, scalar_prefetch = 0 : i64, scratch_operands = 0 : i64, tpu.core_type = #tpu.core_type<tc>, window_params = [{transform_indices = @transform_0, window_bounds = array<i64: 8, 32>}, {pipeline_mode = #tpu.pipeline_mode<synchronous>, transform_indices = @transform_1, window_bounds = array<i64: 32, 128>}, {pipeline_mode = #tpu.pipeline_mode<synchronous>, transform_indices = @transform_2, window_bounds = array<i64: 1, 128>}, {transform_indices = @transform_3, window_bounds = array<i64: 8, 128>}]} {
    %c0 = arith.constant 0 : index
    %c0_0 = arith.constant 0 : index
    %0 = vector.load %arg1[%c0, %c0_0] : memref<8x32xf32, #tpu.memory_space<vmem>>, vector<8x32xf32>
    %1 = arith.truncf %0 : vector<8x32xf32> to vector<8x32xbf16>
    %c0_1 = arith.constant 0 : index
    %c0_2 = arith.constant 0 : index
    %2 = vector.load %arg2[%c0_1, %c0_2] : memref<32x128xbf16, #tpu.memory_space<vmem>>, vector<32x128xbf16>
    %cst = arith.constant dense<0.000000e+00> : vector<8x128xf32>
    %3 = tpu.matmul %1, %2, %cst {dimension_numbers = #tpu.dot_dimension_numbers<[1], [0], [0], [1], [0, 0, 1, 1], [], []>} : vector<8x32xbf16>, vector<32x128xbf16>, vector<8x128xf32> -> vector<8x128xf32>
    %c0_3 = arith.constant 0 : index
    %c0_4 = arith.constant 0 : index
    %4 = vector.load %arg3[%c0_3, %c0_4] : memref<1x128xf32, #tpu.memory_space<vmem>>, vector<1x128xf32>
    %5 = vector.broadcast %4 : vector<1x128xf32> to vector<8x128xf32>
    %6 = arith.addf %3, %5 : vector<8x128xf32>
    %cst_5 = arith.constant 5.000000e-01 : f32
    %7 = vector.broadcast %cst_5 : f32 to vector<8x128xf32>
    %8 = arith.mulf %7, %6 : vector<8x128xf32>
    %9 = math.tanh %8 : vector<8x128xf32>
    %cst_6 = arith.constant 5.000000e-01 : f32
    %10 = vector.broadcast %cst_6 : f32 to vector<8x128xf32>
    %11 = arith.mulf %10, %9 : vector<8x128xf32>
    %cst_7 = arith.constant 5.000000e-01 : f32
    %12 = vector.broadcast %cst_7 : f32 to vector<8x128xf32>
    %13 = arith.addf %11, %12 : vector<8x128xf32>
    %c0_8 = arith.constant 0 : index
    %c0_9 = arith.constant 0 : index
    %14 = vector.load %arg4[%c0_8, %c0_9] : memref<8x128xf32, #tpu.memory_space<vmem>>, vector<8x128xf32>
    tpu.vector_store %arg4[%c0_8, %c0_9], %13 {strides = array<i32>} : memref<8x128xf32, #tpu.memory_space<vmem>>, vector<8x128xf32>,
    return
  }
  func.func @transform_0(%arg0: i32) -> (i32, i32) {
    %c0_i32 = arith.constant 0 : i32
    %c0_i32_0 = arith.constant 0 : i32
    return %arg0, %c0_i32 : i32, i32
  }
  func.func @transform_1(%arg0: i32) -> (i32, i32) {
    %c0_i32 = arith.constant 0 : i32
    %c0_i32_0 = arith.constant 0 : i32
    %c0_i32_1 = arith.constant 0 : i32
    return %c0_i32, %c0_i32_0 : i32, i32
  }
  func.func @transform_2(%arg0: i32) -> (i32, i32) {
    %c0_i32 = arith.constant 0 : i32
    %c0_i32_0 = arith.constant 0 : i32
    %c0_i32_1 = arith.constant 0 : i32
    return %c0_i32, %c0_i32_0 : i32, i32
  }
  func.func @transform_3(%arg0: i32) -> (i32, i32) {
    %c0_i32 = arith.constant 0 : i32
    %c0_i32_0 = arith.constant 0 : i32
    return %arg0, %c0_i32 : i32, i32
  }
}

</mosaic_0001>

<llo_original>
// kernel: tpu_custom_call.1
$region0: #{tpu_custom_call.1}
  #allocation0 [shape = 'u32[]', space=smem, size = 0x4, offset = 0x4, fixed_abs, tag = 'smem constant byte address 0x4 - core index']
  #allocation1 [shape = 'u32[72,128]{1,0:T(1,128)}', space=vmem, size = 0x9000, scoped, tag = 'internal scratch']
  %s0 = inlined_call_operand.hbm [shape: f32[8,32], index: 0, kind: input, shape index: {}]
  %s1 = inlined_call_operand.hbm [shape: bf16[32,128], index: 1, kind: input, shape index: {}]
  %s2 = inlined_call_operand.vmem [shape: f32[1,128], index: 2, kind: input, shape index: {}]
  %s3 = inlined_call_operand.hbm [shape: f32[8,128], index: 3, kind: output, shape index: {}]
  %s4 = sld [smem:[#allocation0]]
  $region30: #{tpu_custom_call.1} parent=0
    _
  %s6 = ssub.s32 1, %s4
  %s7 = scalar_select 0, %s6, %s4
  $region1: #{tpu_custom_call.1} parent=0
    #allocation2 [shape = 'u8[4096]{0}', space=vmem, size = 0x1000, scoped, tag = 'input window, operand 0, single buffered']
    #allocation3 [shape = 's32[1]{0}', space=sflag, size = 0x4, scoped, tag = 'scoped memory for tpu_custom_call.1']
    #allocation4 [shape = 's32[1]{0}', space=sflag, size = 0x4, scoped, tag = 'scoped memory for tpu_custom_call.1']
    #allocation5 [shape = 'u8[8192]{0}', space=vmem, size = 0x2000, scoped, tag = 'input window, operand 1, single buffered']
    #allocation6 [shape = 's32[1]{0}', space=sflag, size = 0x4, scoped, tag = 'scoped memory for tpu_custom_call.1']
    #allocation7 [shape = 'u8[4096]{0}', space=vmem, size = 0x1000, scoped, tag = 'output window, operand 0, single buffered']
    %8 = vsyncpa [#allocation3], 0
    %9 = vsyncpa [#allocation6], 0
    %10 = vsyncpa [#allocation4], 0
    // Predicated region
    $region2: #{tpu_custom_call.1} parent=1 // pred_check
      _
    $region3: #{tpu_custom_call.1} parent=1 // pred_check_branch
      %12 = sbr.rel (0) target = $region5
    $region4: #{tpu_custom_call.1} parent=1 // pred_region
      %14 = vsyncadd [#allocation3], 0
      %s16 = sshll.u32 %s0, 4
      %s17 = int_to_ptr.hbm [resolvable:$true] %s16
      %s18 = sshll.u32 [#allocation2], 4
      %s19 = int_to_ptr.vmem [resolvable:$true] %s18
      %21 = dma.hbm_to_vmem [thread:$0]  %s17, 128, %s19, [#allocation3]
    $region5: #{tpu_custom_call.1} parent=1 // pred_fallthru
      _
    // Predicated region
    $region6: #{tpu_custom_call.1} parent=1 // pred_check
      _
    $region7: #{tpu_custom_call.1} parent=1 // pred_check_branch
      %23 = sbr.rel (0) target = $region9
    $region8: #{tpu_custom_call.1} parent=1 // pred_region
      %25 = vsyncadd [#allocation6], 0
      %s26 = sshll.u32 %s1, 4
      %s27 = int_to_ptr.hbm [resolvable:$true] %s26
      %s28 = sshll.u32 [#allocation5], 4
      %s29 = int_to_ptr.vmem [resolvable:$true] %s28
      %34 = dma.hbm_to_vmem [thread:$0]  %s27, 256, %s29, [#allocation6], 64, 64, 4
    $region9: #{tpu_custom_call.1} parent=1 // pred_fallthru
      _
    // Predicated region
    $region10: #{tpu_custom_call.1} parent=1 // pred_check
      _
    $region11: #{tpu_custom_call.1} parent=1 // pred_check_branch
      %36 = sbr.rel (0) target = $region13
    $region12: #{tpu_custom_call.1} parent=1 // pred_region
      _
    $region13: #{tpu_custom_call.1} parent=1 // pred_fallthru
      _
    // Predicated region
    $region14: #{tpu_custom_call.1} parent=1 // pred_check
      _
    $region15: #{tpu_custom_call.1} parent=1 // pred_check_branch
      %38 = sbr.rel (0) target = $region17
    $region16: #{tpu_custom_call.1} parent=1 // pred_region
      %40 = dma.done [#allocation3], 128
    $region17: #{tpu_custom_call.1} parent=1 // pred_fallthru
      _
    // Predicated region
    $region18: #{tpu_custom_call.1} parent=1 // pred_check
      _
    $region19: #{tpu_custom_call.1} parent=1 // pred_check_branch
      %42 = sbr.rel (0) target = $region21
    $region20: #{tpu_custom_call.1} parent=1 // pred_region
      %44 = dma.done [#allocation6], 256
    $region21: #{tpu_custom_call.1} parent=1 // pred_fallthru
      _
    %v46 = vld [vmem:[#allocation2] sm:$0xff]
    %v47 = vpack.c.bf16 %v46, %v46
    %v48 = vld [vmem:[#allocation5] sm:$0xf]
    %v49 = vld [vmem:[#allocation5 + $0x4] sm:$0xf]
    %v50 = vld [vmem:[#allocation5 + $0x8] sm:$0xf]
    %v51 = vld [vmem:[#allocation5 + $0xc] sm:$0xf]
    %v52 = vld [vmem:[%s2] sm:$0x1]
    %v54 = vperm.slane %v52, 0
    %v60 = vunpack.c.l.b16 %v48
    %v61 = vunpack.c.l.b16 %v49
    %v62 = vunpack.c.l.b16 %v50
    %v63 = vunpack.c.l.b16 %v51
    %v64 = vpack.c.b16 %v61, %v60
    %v65 = vpack.c.b16 %v63, %v62
    %vm68 = vcmask 261120
    %v70 = vsel %vm68, %v47, 0
    %72 = vmatpush.bf16.msra.mxu0 0
    %73 = vmatpush.bf16.msra.mxu0 0
    %74 = vmatpush.bf16.msra.mxu0 0
    %75 = vmatpush.bf16.msra.mxu0 0
    %76 = vmatpush.bf16.msra.mxu0 0
    %77 = vmatpush.bf16.msra.mxu0 0
    %78 = vmatpush.bf16.msra.mxu0 %v65
    %79 = vmatpush.bf16.msra.mxu0 %v64
    %80 = vmatmul.bf16.gmra.mxu0 %v70
    %v81 = vpop.f32.mrf.mxu0
    %v82 = vadd.f32 %v54, %v81
    %v83 = vpop.f32.mrf.mxu0
    %84 = vdwg.mxu0
    %v85 = vmul.f32 %v82, 0.5
    %v86 = vtanh.pop %v85
    %v87 = vmul.f32 %v86, 0.5
    %v88 = vadd.f32 %v87, 0.5
    %89 = vst [vmem:[#allocation7] sm:$0xff] %v88
    // Predicated region
    $region22: #{tpu_custom_call.1} parent=1 // pred_check
      _
    $region23: #{tpu_custom_call.1} parent=1 // pred_check_branch
      %91 = sbr.rel (0) target = $region25
    $region24: #{tpu_custom_call.1} parent=1 // pred_region
      %93 = vsyncadd [#allocation4], 0
      %s95 = sshll.u32 [#allocation7], 4
      %s96 = int_to_ptr.vmem [resolvable:$true] %s95
      %s97 = sshll.u32 %s3, 4
      %s98 = int_to_ptr.hbm [resolvable:$true] %s97
      %100 = dma.vmem_to_hbm [thread:$0]  %s96, 128, %s98, [#allocation4]
    $region25: #{tpu_custom_call.1} parent=1 // pred_fallthru
      _
    // Predicated region
    $region26: #{tpu_custom_call.1} parent=1 // pred_check
      _
    $region27: #{tpu_custom_call.1} parent=1 // pred_check_branch
      %102 = sbr.rel (0) target = $region29
    $region28: #{tpu_custom_call.1} parent=1 // pred_region
      %104 = dma.done [#allocation4], 128
    $region29: #{tpu_custom_call.1} parent=1 // pred_fallthru
      _
    %105 = vsyncpa [#allocation3], 1
    %106 = vsyncpa [#allocation6], 1
    %107 = vsyncpa [#allocation4], 1

</llo_original>
